<compile_context>
chip_gen: v7x
topology: tpu7x:2x2x1
jax: 0.10.0
libtpu: 0.0.40
codegen_flags: <defaults>
</compile_context>

<pallas_src>
import functools

import jax
import jax.numpy as jnp
from jax import lax
from jax.experimental import pallas as pl
from jax.experimental.pallas import tpu as pltpu

_MIB = 1024 * 1024


# --------------------------------------------------------------------------------------------
# Runtime probes (cached; each runs once per process).
# --------------------------------------------------------------------------------------------
@functools.lru_cache(maxsize=None)
def _roll_is_numpy_convention() -> bool:
    """True if pltpu.roll follows jnp.roll semantics (out[i] = x[i - shift])."""

    def probe(x_ref, o_ref):
        o_ref[...] = pltpu.roll(x_ref[...], 1, axis=1)

    x = jnp.broadcast_to(jnp.arange(128, dtype=jnp.float32), (8, 128))
    y = pl.pallas_call(probe, out_shape=jax.ShapeDtypeStruct((8, 128), jnp.float32))(x)
    return bool(float(y[0, 1]) == 0.0)  # numpy convention: y[1] == x[0] == 0


@functools.lru_cache(maxsize=None)
def _vmem_capacity_bytes() -> int:
    """Physical VMEM per TensorCore (128 MiB on v5e/v6e, 64 MiB on v7x)."""
    try:
        info = pltpu.get_tpu_info()
        for name in ("vmem_capacity_bytes", "vmem_bytes", "vmem_size_bytes", "vmem_size"):
            val = getattr(info, name, None)
            if val:
                return int(val)
    except Exception:  # defensive: if the query is unavailable, assume the smallest generation
        pass
    return 64 * _MIB


# --------------------------------------------------------------------------------------------
# Kernel
# --------------------------------------------------------------------------------------------
def _make_grad_kernel(d0, d1, d2, trows, has_halo, np_roll):
    """Kernel over a (bb, rows, D1*D2) tile; rows = trows main rows (+ 8 halo rows)."""
    Z = d2
    L = d1 * d2
    z_pow2 = (Z & (Z - 1)) == 0

    def shift_lane(x, k):
        # result[..., j] = x[..., j + k] (wrapped lanes are always masked by the caller)
        n = x.shape[2]
        return pltpu.roll(x, (n - k) % n if np_roll else k, axis=2)

    def shift_row(x):
        # result[:, r, :] = x[:, r + 1, :] (wrapped rows are always masked / never owned)
        n = x.shape[1]
        return pltpu.roll(x, n - 1 if np_roll else 1, axis=1)

    def compute(w, out_ref):
        rows = w.shape[1]
        f32 = jnp.float32

        # Hoisted index vectors / masks.  Each 0/1 mask is simultaneously (a) torch's zero slice
        # of the padded diff along that dim and (b) the kill-switch for the roll wrap-around.
        j = lax.broadcasted_iota(jnp.int32, (1, 1, L), 2)
        zidx = (j & (Z - 1)) if z_pow2 else (j % Z)
        mx = (j < (L - Z)).astype(f32)                       # x <= X-2   (lane mask, shift by Z)
        mz = (zidx < (Z - 1)).astype(f32)                    # z <= Z-2   (lane mask, shift by 1)
        r = lax.broadcasted_iota(jnp.int32, (1, rows, 1), 1)
        yglob = r + pl.program_id(1) * trows
        my = (yglob < (d0 - 1)).astype(f32)                  # y <= Y-2   (row mask)
        my2 = 2.0 * my                                       # weighted post-square masks
        mz2 = 2.0 * mz

        # ---- X direction: Tx and its second diffs Txx / Txy / Txz ----
        t_x = (shift_lane(w, Z) - w) * mx
        d_ = shift_lane(t_x, Z) - t_x
        acc = (d_ * d_) * mx                                 # Txx, weight 1
        d_ = shift_row(t_x) - t_x
        acc = acc + (d_ * d_) * my2                          # Txy, weight 2
        d_ = shift_lane(t_x, 1) - t_x
        acc = acc + (d_ * d_) * mz2                          # Txz, weight 2

        # ---- Y direction: Ty and Tyy / Tyz ----
        t_y = (shift_row(w) - w) * my
        d_ = shift_row(t_y) - t_y
        acc = acc + (d_ * d_) * my                           # Tyy, weight 1
        d_ = shift_lane(t_y, 1) - t_y
        acc = acc + (d_ * d_) * mz2                          # Tyz, weight 2

        # ---- Z direction: Tz and Tzz ----
        t_z = (shift_lane(w, 1) - w) * mz
        d_ = shift_lane(t_z, 1) - t_z
        acc = acc + (d_ * d_) * mz                           # Tzz, weight 1

        # Single cross-lane/sublane reduction per block.  Halo rows belong to the next D0 tile;
        # dropping them with an aligned (trows % 8 == 0) sublane slice avoids double counting.
        owned = acc[:, :trows, :] if has_halo else acc
        total = jnp.sum(owned)
        out_ref[...] = jnp.zeros((1, 1, 128), jnp.float32) + total

    if has_halo:
        def kernel(p_ref, a_ref, ph_ref, ah_ref, out_ref):
            c = jnp.float32(0.2)
            w_main = p_ref[...].astype(jnp.float32) - c * a_ref[...].astype(jnp.float32)
            w_halo = ph_ref[...].astype(jnp.float32) - c * ah_ref[...].astype(jnp.float32)
            compute(jnp.concatenate([w_main, w_halo], axis=1), out_ref)
    else:
        def kernel(p_ref, a_ref, out_ref):
            c = jnp.float32(0.2)
            compute(p_ref[...].astype(jnp.float32) - c * a_ref[...].astype(jnp.float32), out_ref)

    return kernel


# --------------------------------------------------------------------------------------------
# Tiling heuristics
# --------------------------------------------------------------------------------------------
def _choose_tiles(b, d0, lanes, in_itemsize, budget_bytes, block_b=None, block_d0=None):
    """Pick (block_b, block_d0, est_block_bytes) for the (B, D0) grid."""
    if block_d0 is not None:
        assert d0 % block_d0 == 0, "block_d0 must divide D0"
        if block_d0 != d0:
            assert d0 % 8 == 0 and block_d0 % 8 == 0, "D0 tiling requires 8-row alignment"
        ty_opts = [block_d0]
    elif d0 % 8 == 0 and d0 > 8:
        ty_opts = [t for t in range(8, d0 + 1, 8) if d0 % t == 0]
    else:
        ty_opts = [d0]
    if block_b is not None:
        assert b % block_b == 0, "block_b must divide N*C"
        bb_opts = [block_b]
    else:
        bb_opts = [x for x in range(1, b + 1) if b % x == 0]

    def block_bytes(bb, ty, halo):
        rows = ty + (8 if halo else 0)
        dma = 2 * bb * rows * lanes * in_itemsize        # p + a, double-buffered pipeline copies
        live = 6 * bb * rows * lanes * 4                 # w, a first diff, transients, acc, slack
        return dma + live

    cands = []
    for ty in ty_opts:
        ny = d0 // ty
        halo = ny > 1
        for bb in bb_opts:
            nblk = (b // bb) * ny
            cands.append((block_bytes(bb, ty, halo), nblk, bb, ty, ny))

    def score(c):
        bytes_, nblk, bb, ty, ny = c
        if bytes_ > budget_bytes:
            return (0, 0, 0, -bytes_, 0)                 # nothing fits: take the smallest block
        # Fits: prefer >= 4 grid steps (keeps both v7x TCs + the DMA pipeline busy), then an even
        # step count, then the biggest owned payload (amortizes ~0.35us/step), then fewer D0
        # tiles (less halo re-read).
        return (1, int(nblk >= 4), int(nblk % 2 == 0), bb * ty, -ny)

    best = max(cands, key=score)
    bytes_, _, bb, ty, _ = best
    return bb, ty, bytes_


# --------------------------------------------------------------------------------------------
# Public wrapper
# --------------------------------------------------------------------------------------------
def grad_bending_penalty(pred, atlas_prior, *, block_b=None, block_d0=None):
    """Pallas TPU equivalent of Grad.forward(pred, atlas_prior) -> scalar.  Inputs are NCDHW."""
    assert pred.shape == atlas_prior.shape and pred.ndim == 5, "expect matching NCDHW inputs"
    n, c, d0, d1, d2 = pred.shape
    assert d0 >= 2 and d1 >= 2 and d2 >= 2, "spatial dims must be >= 2"
    b = n * c
    lanes = d1 * d2
    numel = b * d0 * lanes

    # Lane-dense layout (B, D0, D1*D2): contiguous reshape, no data movement, native dtype
    # (bf16 inputs are supported; the f32 cast happens per tile inside the kernel).
    # TODO(synk): optional lane padding of D2 to a multiple of 128 (per the review) is not
    # implemented; the kernel is correct for any D1*D2 via the masks.
    p = pred.reshape(b, d0, lanes)
    a = atlas_prior.reshape(b, d0, lanes)

    # Generation-aware tiling: budget ~60% of physical VMEM for one block.
    cap = _vmem_capacity_bytes()
    budget = int(0.60 * cap)
    in_itemsize = pred.dtype.itemsize + atlas_prior.dtype.itemsize
    bb, td0, est_bytes = _choose_tiles(b, d0, lanes, in_itemsize, budget, block_b, block_d0)
    nb, ny = b // bb, d0 // td0
    has_halo = ny > 1

    # Always set the scoped-VMEM limit (v5e's default is only 16 MiB) with headroom, but stay
    # below physical capacity (64 MiB per TensorCore on v7x).
    vmem_limit = int(max(32 * _MIB, min(int(1.5 * est_bytes), cap - 4 * _MIB)))

    np_roll = _roll_is_numpy_convention()
    kernel = _make_grad_kernel(d0, d1, d2, td0, has_halo, np_roll)

    in_specs = [
        pl.BlockSpec((bb, td0, lanes), lambda i, j: (i, j, 0)),
        pl.BlockSpec((bb, td0, lanes), lambda i, j: (i, j, 0)),
    ]
    operands = [p, a]
    if has_halo:
        # The Y-direction second diffs need 2 rows past the tile; fetch a full 8-row block so the
        # halo block stays (8,128)-aligned.  The last D0 tile clamps to the final 8-row block;
        # its (duplicate) halo contributions are masked / dropped by the ownership slice.
        hb = td0 // 8
        last8 = d0 // 8 - 1
        halo_spec = pl.BlockSpec(
            (bb, 8, lanes), lambda i, j: (i, jnp.minimum((j + 1) * hb, last8), 0))
        in_specs += [halo_spec, halo_spec]
        operands += [p, a]

    out_specs = pl.BlockSpec((1, 1, 128), lambda i, j: (i * ny + j, 0, 0))

    halo_factor = 1.0 + (8.0 / td0 if has_halo else 0.0)
    cost = pl.CostEstimate(
        flops=int(36 * numel * halo_factor),
        transcendentals=0,
        bytes_accessed=int((p.size * p.dtype.itemsize + a.size * a.dtype.itemsize) * halo_factor)
        + nb * ny * 128 * 4,
    )

    partials = pl.pallas_call(
        kernel,
        out_shape=jax.ShapeDtypeStruct((nb * ny, 1, 128), jnp.float32),
        grid=(nb, ny),
        in_specs=in_specs,
        out_specs=out_specs,
        compiler_params=pltpu.CompilerParams(
            dimension_semantics=("parallel", "parallel"),
            vmem_limit_bytes=vmem_limit,
        ),
        cost_estimate=cost,
    )(*operands)

    # Every torch .mean() divides by the full tensor numel (the padded diffs preserve shape).
    return jnp.sum(partials[:, 0, 0]) / jnp.float32(numel)


# --------------------------------------------------------------------------------------------
# Pure-JAX reference (for the self-test only)
# --------------------------------------------------------------------------------------------
def _pdiff_ref(y, axis):
    n = y.shape[axis]
    d = lax.slice_in_dim(y, 1, n, axis=axis) - lax.slice_in_dim(y, 0, n - 1, axis=axis)
    zshape = y.shape[:axis] + (1,) + y.shape[axis + 1:]
    return jnp.concatenate([d, jnp.zeros(zshape, y.dtype)], axis=axis)


def _grad_reference(pred, atlas_prior):
    def d(y, dim):
        return _pdiff_ref(y, dim + 2)

    ty, tx, tz = d(pred, 0), d(pred, 1), d(pred, 2)
    tya, txa, tza = d(atlas_prior, 0), d(atlas_prior, 1), d(atlas_prior, 2)

    def m(t, ta):
        return jnp.mean((t - 0.2 * ta) ** 2)

    return (m(d(ty, 0), d(tya, 0)) + m(d(tx, 1), d(txa, 1)) + m(d(tz, 2), d(tza, 2))
            + 2 * m(d(tx, 0), d(txa, 0)) + 2 * m(d(tx, 2), d(txa, 2))
            + 2 * m(d(ty, 2), d(tya, 2)))


if __name__ == "__main__":
    key = jax.random.PRNGKey(0)
    k1, k2, k3, k4 = jax.random.split(key, 4)

    # Case 1: single D0 tile, f32, default tile chooser.  N=2, C=4, spatial (8, 8, 16) -> L=128.
    pred = jax.random.normal(k1, (2, 4, 8, 8, 16), dtype=jnp.float32)
    atlas = jax.random.normal(k2, (2, 4, 8, 8, 16), dtype=jnp.float32)
    out = jax.block_until_ready(grad_bending_penalty(pred, atlas))
    ref = _grad_reference(pred, atlas)
    assert jnp.allclose(out, ref, rtol=1e-4, atol=1e-5), ("case1", out, ref)

    # Case 2: multi-tile D0 exercising the 8-row halo path (D0=16, forced block_d0=8).
    pred2 = jax.random.normal(k3, (1, 2, 16, 8, 16), dtype=jnp.float32)
    atlas2 = jax.random.normal(k4, (1, 2, 16, 8, 16), dtype=jnp.float32)
    out2 = jax.block_until_ready(grad_bending_penalty(pred2, atlas2, block_b=1, block_d0=8))
    ref2 = _grad_reference(pred2, atlas2)
    assert jnp.allclose(out2, ref2, rtol=1e-4, atol=1e-5), ("case2", out2, ref2)

    # Case 3: bf16 inputs (halves HBM bytes on the bandwidth-bound generations; math stays f32).
    pred3 = pred.astype(jnp.bfloat16)
    atlas3 = atlas.astype(jnp.bfloat16)
    out3 = jax.block_until_ready(grad_bending_penalty(pred3, atlas3))
    ref3 = _grad_reference(pred3.astype(jnp.float32), atlas3.astype(jnp.float32))
    assert jnp.allclose(out3, ref3, rtol=1e-3, atol=1e-4), ("case3", out3, ref3)

    print("KERNEL_OK")
</pallas_src>

<mosaic_0001>
module attributes {stable_mosaic.version = 11 : i64} {
  func.func @probe(%arg0: memref<8x128xf32, #tpu.memory_space<vmem>>, %arg1: memref<8x128xf32, #tpu.memory_space<vmem>>) attributes {dimension_semantics = [], scalar_prefetch = 0 : i64, scratch_operands = 0 : i64, tpu.core_type = #tpu.core_type<tc>} {
    %c0 = arith.constant 0 : index
    %c0_0 = arith.constant 0 : index
    %0 = vector.load %arg0[%c0, %c0_0] : memref<8x128xf32, #tpu.memory_space<vmem>>, vector<8x128xf32>
    %c1_i32 = arith.constant 1 : i32
    %1 = tpu.dynamic_rotate %0 by %c1_i32 dim 1 : vector<8x128xf32>, i32 -> vector<8x128xf32>
    %c0_1 = arith.constant 0 : index
    %c0_2 = arith.constant 0 : index
    %2 = vector.load %arg1[%c0_1, %c0_2] : memref<8x128xf32, #tpu.memory_space<vmem>>, vector<8x128xf32>
    tpu.vector_store %arg1[%c0_1, %c0_2], %1 {strides = array<i32>} : memref<8x128xf32, #tpu.memory_space<vmem>>, vector<8x128xf32>,
    return
  }
}

</mosaic_0001>

<llo_original>
// kernel: tpu_custom_call.1
$region0: #{tpu_custom_call.1}
  #allocation0 [shape = 'u32[]', space=smem, size = 0x4, offset = 0x4, fixed_abs, tag = 'smem constant byte address 0x4 - core index']
  #allocation1 [shape = 'u32[144,128]{1,0:T(1,128)}', space=vmem, size = 0x12000, scoped, tag = 'internal scratch']
  %s0 = inlined_call_operand.hbm [shape: f32[8,128], index: 0, kind: input, shape index: {}]
  %s1 = inlined_call_operand.hbm [shape: f32[8,128], index: 1, kind: output, shape index: {}]
  %s2 = sld [smem:[#allocation0]]
  $region18: #{tpu_custom_call.1} parent=0
    _
  %s4 = ssub.s32 1, %s2
  %s5 = scalar_select 0, %s4, %s2
  $region1: #{tpu_custom_call.1} parent=0
    #allocation2 [shape = 'u8[4096]{0}', space=vmem, size = 0x1000, scoped, tag = 'input window, operand 0, single buffered']
    #allocation3 [shape = 's32[1]{0}', space=sflag, size = 0x4, scoped, tag = 'scoped memory for tpu_custom_call.1']
    #allocation4 [shape = 's32[1]{0}', space=sflag, size = 0x4, scoped, tag = 'scoped memory for tpu_custom_call.1']
    #allocation5 [shape = 'u8[4096]{0}', space=vmem, size = 0x1000, scoped, tag = 'output window, operand 0, single buffered']
    %6 = vsyncpa [#allocation3], 0
    %7 = vsyncpa [#allocation4], 0
    // Predicated region
    $region2: #{tpu_custom_call.1} parent=1 // pred_check
      _
    $region3: #{tpu_custom_call.1} parent=1 // pred_check_branch
      %9 = sbr.rel (0) target = $region5
    $region4: #{tpu_custom_call.1} parent=1 // pred_region
      %s11 = ssub.s32 128, 128
      %12 = vsyncadd [#allocation3], %s11
      %s14 = sshll.u32 [#allocation2], 4
      %s15 = int_to_ptr.vmem [resolvable:$true] %s14
      %17 = dma.hbm_to_vmem [thread:$0]  %s0, 128, %s15, [#allocation3]
    $region5: #{tpu_custom_call.1} parent=1 // pred_fallthru
      _
    // Predicated region
    $region6: #{tpu_custom_call.1} parent=1 // pred_check
      _
    $region7: #{tpu_custom_call.1} parent=1 // pred_check_branch
      %19 = sbr.rel (0) target = $region9
    $region8: #{tpu_custom_call.1} parent=1 // pred_region
      %20 = dma.done [#allocation3], 128
    $region9: #{tpu_custom_call.1} parent=1 // pred_fallthru
      _
    %v21 = vld [vmem:[#allocation2] sm:$0xff]
    %22 = vrot.lane.b32.xlu0 %v21, 1
    %v23 = vpop.permute.xlu0 %22
    %24 = vst [vmem:[#allocation5] sm:$0xff] %v23
    // Predicated region
    $region10: #{tpu_custom_call.1} parent=1 // pred_check
      _
    $region11: #{tpu_custom_call.1} parent=1 // pred_check_branch
      %26 = sbr.rel (0) target = $region13
    $region12: #{tpu_custom_call.1} parent=1 // pred_region
      %s28 = ssub.s32 128, 128
      %29 = vsyncadd [#allocation4], %s28
      %s31 = sshll.u32 [#allocation5], 4
      %s32 = int_to_ptr.vmem [resolvable:$true] %s31
      %34 = dma.vmem_to_hbm [thread:$0]  %s32, 128, %s1, [#allocation4]
    $region13: #{tpu_custom_call.1} parent=1 // pred_fallthru
      _
    // Predicated region
    $region14: #{tpu_custom_call.1} parent=1 // pred_check
      _
    $region15: #{tpu_custom_call.1} parent=1 // pred_check_branch
      %36 = sbr.rel (0) target = $region17
    $region16: #{tpu_custom_call.1} parent=1 // pred_region
      %37 = dma.done [#allocation4], 128
    $region17: #{tpu_custom_call.1} parent=1 // pred_fallthru
      _
    %38 = vsyncpa [#allocation3], 1
    %39 = vsyncpa [#allocation4], 1

</llo_original>
